<compile_context>
chip_gen: v5e
topology: v5e:2x2
jax: 0.10.0
libtpu: 0.0.40
codegen_flags: <defaults>
</compile_context>

<pallas_src>
import jax
import jax.numpy as jnp
from jax.experimental import pallas as pl
from jax.experimental.pallas import tpu as pltpu


def _round_up(x: int, m: int) -> int:
    return ((x + m - 1) // m) * m


# Largest batch tile per grid step. 4096 rows keeps the VMEM footprint (x tile,
# double buffers, f32 intermediates, lane-padded output) well under v7x's
# 32 MiB default scoped VMEM while amortizing the ~0.35 us/step fixed overhead.
MAX_TB = 4096


def _choose_batch_tile(batch: int) -> int:
    tb = min(MAX_TB, _round_up(batch, 8))
    # If a large batch would otherwise be a single grid step, split it in two so
    # dimension_semantics=("parallel",) gives both v7x TensorCores a tile
    # (no-op on single-TC v5e/v6e). Small batches stay one tile: step overhead
    # dominates there and a second step would only add cost.
    if batch > 2048 and pl.cdiv(batch, tb) < 2:
        tb = _round_up(pl.cdiv(batch, 2), 8)
    return tb


def _dqn_mlp_kernel(x_ref, w1_ref, b1_ref, w2_ref, b2_ref, w3_ref, b3_ref, out_ref):
    """Fused 3-layer MLP: bf16 MXU inputs for layers 1-2, f32 accumulate,
    f32 bias/tanh, f32 final layer."""
    x = x_ref[...]                                                    # (TB, D)  f32
    h1 = jnp.tanh(
        jnp.dot(x.astype(jnp.bfloat16), w1_ref[...],
                preferred_element_type=jnp.float32) + b1_ref[...]
    )                                                                 # (TB, H1) f32
    h2 = jnp.tanh(
        jnp.dot(h1.astype(jnp.bfloat16), w2_ref[...],
                preferred_element_type=jnp.float32) + b2_ref[...]
    )                                                                 # (TB, H2) f32
    # Last layer kept in f32 (tiny K/N): keeps Q-values close to f32 reference.
    out_ref[...] = (
        jnp.dot(h2, w3_ref[...], preferred_element_type=jnp.float32) + b3_ref[...]
    )                                                                 # (TB, A)  f32


def prepare_params(params):
    """One-time dtype prep, hoisted out of the per-call forward path.

    Layers 1-2 weights -> bf16 (MXU inputs); biases and layer-3 weight stay f32.
    """
    return {
        "w1": params["w1"].astype(jnp.bfloat16),
        "b1": params["b1"].astype(jnp.float32),
        "w2": params["w2"].astype(jnp.bfloat16),
        "b2": params["b2"].astype(jnp.float32),
        "w3": params["w3"].astype(jnp.float32),
        "b3": params["b3"].astype(jnp.float32),
    }


def dqn_net_forward(obs, prepped, obs_dim, action_dim):
    """Forward pass of DqnNet (matches obs.reshape(-1, obs_dim) @ MLP)."""
    x = obs.reshape(-1, obs_dim).astype(jnp.float32)
    batch = x.shape[0]

    tb = _choose_batch_tile(batch)
    grid = (pl.cdiv(batch, tb),)   # partial last block handled by Pallas masking

    h1 = prepped["w1"].shape[1]
    h2 = prepped["w2"].shape[1]

    out = pl.pallas_call(
        _dqn_mlp_kernel,
        out_shape=jax.ShapeDtypeStruct((batch, action_dim), jnp.float32),
        grid_spec=pltpu.PrefetchScalarGridSpec(
            num_scalar_prefetch=0,
            grid=grid,
            in_specs=[
                # Activations stream over the batch grid axis.
                pl.BlockSpec((tb, obs_dim), lambda i: (i, 0)),
                # Weights/biases: constant index maps -> VMEM-resident, no re-DMA.
                pl.BlockSpec((obs_dim, h1), lambda i: (0, 0)),
                pl.BlockSpec((1, h1), lambda i: (0, 0)),
                pl.BlockSpec((h1, h2), lambda i: (0, 0)),
                pl.BlockSpec((1, h2), lambda i: (0, 0)),
                pl.BlockSpec((h2, action_dim), lambda i: (0, 0)),
                pl.BlockSpec((1, action_dim), lambda i: (0, 0)),
            ],
            out_specs=pl.BlockSpec((tb, action_dim), lambda i: (i, 0)),
        ),
        compiler_params=pltpu.CompilerParams(
            dimension_semantics=("parallel",),
        ),
    )(x, prepped["w1"], prepped["b1"], prepped["w2"], prepped["b2"],
      prepped["w3"], prepped["b3"])

    return out


def init_params(key, obs_dim, net_arch, action_dim):
    """Deterministic synthetic parameter init (stand-in for layer_init)."""
    dims = [obs_dim] + list(net_arch) + [action_dim]
    params = {}
    for i in range(3):
        key, wk = jax.random.split(key)
        fan_in = dims[i]
        w = jax.random.normal(wk, (dims[i], dims[i + 1]), dtype=jnp.float32)
        w = w * (1.0 / jnp.sqrt(jnp.float32(fan_in)))
        b = jnp.zeros((1, dims[i + 1]), dtype=jnp.float32)
        params[f"w{i + 1}"] = w
        params[f"b{i + 1}"] = b
    return params


def reference_forward(obs, params, obs_dim):
    """Plain-JAX f32 reference for correctness checking."""
    x = obs.reshape(-1, obs_dim).astype(jnp.float32)
    h1 = jnp.tanh(x @ params["w1"] + params["b1"])
    h2 = jnp.tanh(h1 @ params["w2"] + params["b2"])
    return h2 @ params["w3"] + params["b3"]


if __name__ == "__main__":
    # obs_shape = (4, 8)  ->  obs_dim = 32   (len(obs_shape) > 1 branch)
    obs_shape = (4, 8)
    obs_dim = obs_shape[0] * obs_shape[1]
    action_dim = 4
    net_arch = [32, 32]

    key = jax.random.PRNGKey(0)
    key, pk, xk1, xk2 = jax.random.split(key, 4)
    params = init_params(pk, obs_dim, net_arch, action_dim)
    prepped = prepare_params(params)   # bf16 conversion done once, outside forward

    # Small demo batch (matches module's flatten: (B, 4, 8) -> (B, 32)).
    batch = 2
    obs = jax.random.normal(xk1, (batch, obs_shape[0], obs_shape[1]), dtype=jnp.float32)
    q_values = jax.block_until_ready(dqn_net_forward(obs, prepped, obs_dim, action_dim))
    ref = reference_forward(obs, params, obs_dim)
    assert q_values.shape == (batch, action_dim)
    assert jnp.allclose(q_values, ref, atol=2e-2, rtol=2e-2), "Pallas mismatch (small batch)"

    # Larger, non-tile-aligned batch to exercise the masked partial-block path
    # (no wrapper jnp.pad / output slice anymore).
    batch2 = 300
    obs2 = jax.random.normal(xk2, (batch2, obs_shape[0], obs_shape[1]), dtype=jnp.float32)
    q2 = jax.block_until_ready(dqn_net_forward(obs2, prepped, obs_dim, action_dim))
    ref2 = reference_forward(obs2, params, obs_dim)
    assert q2.shape == (batch2, action_dim)
    assert jnp.allclose(q2, ref2, atol=2e-2, rtol=2e-2), "Pallas mismatch (tiled batch)"

    # TODO(synk): DqnNet.act() epsilon-greedy branching is host-side Python
    # control flow (random.random vs argmax) and is intentionally not a kernel.
    print("KERNEL_OK")
</pallas_src>

<mosaic_0001>
module attributes {stable_mosaic.version = 11 : i64} {
  func.func @_dqn_mlp_kernel(%arg0: i32, %arg1: memref<8x32xf32, #tpu.memory_space<vmem>>, %arg2: memref<32x32xbf16, #tpu.memory_space<vmem>>, %arg3: memref<1x32xf32, #tpu.memory_space<vmem>>, %arg4: memref<32x32xbf16, #tpu.memory_space<vmem>>, %arg5: memref<1x32xf32, #tpu.memory_space<vmem>>, %arg6: memref<32x4xf32, #tpu.memory_space<vmem>>, %arg7: memref<1x4xf32, #tpu.memory_space<vmem>>, %arg8: memref<8x4xf32, #tpu.memory_space<vmem>>) attributes {dimension_semantics = [#tpu.dimension_semantics<parallel>], iteration_bounds = array<i64: 1>, scalar_prefetch = 0 : i64, scratch_operands = 0 : i64, tpu.core_type = #tpu.core_type<tc>, window_params = [{transform_indices = @transform_0, window_bounds = array<i64: 8, 32>}, {pipeline_mode = #tpu.pipeline_mode<synchronous>, transform_indices = @transform_1, window_bounds = array<i64: 32, 32>}, {pipeline_mode = #tpu.pipeline_mode<synchronous>, transform_indices = @transform_2, window_bounds = array<i64: 1, 32>}, {pipeline_mode = #tpu.pipeline_mode<synchronous>, transform_indices = @transform_3, window_bounds = array<i64: 32, 32>}, {pipeline_mode = #tpu.pipeline_mode<synchronous>, transform_indices = @transform_4, window_bounds = array<i64: 1, 32>}, {pipeline_mode = #tpu.pipeline_mode<synchronous>, transform_indices = @transform_5, window_bounds = array<i64: 32, 4>}, {pipeline_mode = #tpu.pipeline_mode<synchronous>, transform_indices = @transform_6, window_bounds = array<i64: 1, 4>}, {transform_indices = @transform_7, window_bounds = array<i64: 8, 4>}]} {
    %c0 = arith.constant 0 : index
    %c0_0 = arith.constant 0 : index
    %0 = vector.load %arg1[%c0, %c0_0] : memref<8x32xf32, #tpu.memory_space<vmem>>, vector<8x32xf32>
    %1 = arith.truncf %0 : vector<8x32xf32> to vector<8x32xbf16>
    %c0_1 = arith.constant 0 : index
    %c0_2 = arith.constant 0 : index
    %2 = vector.load %arg2[%c0_1, %c0_2] : memref<32x32xbf16, #tpu.memory_space<vmem>>, vector<32x32xbf16>
    %cst = arith.constant dense<0.000000e+00> : vector<8x32xf32>
    %3 = tpu.matmul %1, %2, %cst {dimension_numbers = #tpu.dot_dimension_numbers<[1], [0], [0], [1], [0, 0, 1, 1], [], []>} : vector<8x32xbf16>, vector<32x32xbf16>, vector<8x32xf32> -> vector<8x32xf32>
    %c0_3 = arith.constant 0 : index
    %c0_4 = arith.constant 0 : index
    %4 = vector.load %arg3[%c0_3, %c0_4] : memref<1x32xf32, #tpu.memory_space<vmem>>, vector<1x32xf32>
    %5 = vector.broadcast %4 : vector<1x32xf32> to vector<8x32xf32>
    %6 = arith.addf %3, %5 : vector<8x32xf32>
    %7 = math.tanh %6 : vector<8x32xf32>
    %8 = arith.truncf %7 : vector<8x32xf32> to vector<8x32xbf16>
    %c0_5 = arith.constant 0 : index
    %c0_6 = arith.constant 0 : index
    %9 = vector.load %arg4[%c0_5, %c0_6] : memref<32x32xbf16, #tpu.memory_space<vmem>>, vector<32x32xbf16>
    %cst_7 = arith.constant dense<0.000000e+00> : vector<8x32xf32>
    %10 = tpu.matmul %8, %9, %cst_7 {dimension_numbers = #tpu.dot_dimension_numbers<[1], [0], [0], [1], [0, 0, 1, 1], [], []>} : vector<8x32xbf16>, vector<32x32xbf16>, vector<8x32xf32> -> vector<8x32xf32>
    %c0_8 = arith.constant 0 : index
    %c0_9 = arith.constant 0 : index
    %11 = vector.load %arg5[%c0_8, %c0_9] : memref<1x32xf32, #tpu.memory_space<vmem>>, vector<1x32xf32>
    %12 = vector.broadcast %11 : vector<1x32xf32> to vector<8x32xf32>
    %13 = arith.addf %10, %12 : vector<8x32xf32>
    %14 = math.tanh %13 : vector<8x32xf32>
    %c0_10 = arith.constant 0 : index
    %c0_11 = arith.constant 0 : index
    %15 = vector.load %arg6[%c0_10, %c0_11] : memref<32x4xf32, #tpu.memory_space<vmem>>, vector<32x4xf32>
    %cst_12 = arith.constant dense<0.000000e+00> : vector<8x4xf32>
    %16 = tpu.matmul %14, %15, %cst_12 {dimension_numbers = #tpu.dot_dimension_numbers<[1], [0], [0], [1], [0, 0, 1, 1], [], []>} : vector<8x32xf32>, vector<32x4xf32>, vector<8x4xf32> -> vector<8x4xf32>
    %c0_13 = arith.constant 0 : index
    %c0_14 = arith.constant 0 : index
    %17 = vector.load %arg7[%c0_13, %c0_14] : memref<1x4xf32, #tpu.memory_space<vmem>>, vector<1x4xf32>
    %18 = vector.broadcast %17 : vector<1x4xf32> to vector<8x4xf32>
    %19 = arith.addf %16, %18 : vector<8x4xf32>
    %c0_15 = arith.constant 0 : index
    %c0_16 = arith.constant 0 : index
    %20 = vector.load %arg8[%c0_15, %c0_16] : memref<8x4xf32, #tpu.memory_space<vmem>>, vector<8x4xf32>
    tpu.vector_store %arg8[%c0_15, %c0_16], %19 {strides = array<i32>} : memref<8x4xf32, #tpu.memory_space<vmem>>, vector<8x4xf32>,
    return
  }
  func.func @transform_0(%arg0: i32) -> (i32, i32) {
    %c0_i32 = arith.constant 0 : i32
    %c0_i32_0 = arith.constant 0 : i32
    return %arg0, %c0_i32 : i32, i32
  }
  func.func @transform_1(%arg0: i32) -> (i32, i32) {
    %c0_i32 = arith.constant 0 : i32
    %c0_i32_0 = arith.constant 0 : i32
    %c0_i32_1 = arith.constant 0 : i32
    return %c0_i32, %c0_i32_0 : i32, i32
  }
  func.func @transform_2(%arg0: i32) -> (i32, i32) {
    %c0_i32 = arith.constant 0 : i32
    %c0_i32_0 = arith.constant 0 : i32
    %c0_i32_1 = arith.constant 0 : i32
    return %c0_i32, %c0_i32_0 : i32, i32
  }
  func.func @transform_3(%arg0: i32) -> (i32, i32) {
    %c0_i32 = arith.constant 0 : i32
    %c0_i32_0 = arith.constant 0 : i32
    %c0_i32_1 = arith.constant 0 : i32
    return %c0_i32, %c0_i32_0 : i32, i32
  }
  func.func @transform_4(%arg0: i32) -> (i32, i32) {
    %c0_i32 = arith.constant 0 : i32
    %c0_i32_0 = arith.constant 0 : i32
    %c0_i32_1 = arith.constant 0 : i32
    return %c0_i32, %c0_i32_0 : i32, i32
  }
  func.func @transform_5(%arg0: i32) -> (i32, i32) {
    %c0_i32 = arith.constant 0 : i32
    %c0_i32_0 = arith.constant 0 : i32
    %c0_i32_1 = arith.constant 0 : i32
    return %c0_i32, %c0_i32_0 : i32, i32
  }
  func.func @transform_6(%arg0: i32) -> (i32, i32) {
    %c0_i32 = arith.constant 0 : i32
    %c0_i32_0 = arith.constant 0 : i32
    %c0_i32_1 = arith.constant 0 : i32
    return %c0_i32, %c0_i32_0 : i32, i32
  }
  func.func @transform_7(%arg0: i32) -> (i32, i32) {
    %c0_i32 = arith.constant 0 : i32
    %c0_i32_0 = arith.constant 0 : i32
    return %arg0, %c0_i32 : i32, i32
  }
}

</mosaic_0001>

<llo_original>
// kernel: tpu_custom_call.1
$region0: #{tpu_custom_call.1}
  #allocation0 [shape = 'u32[]', space=smem, size = 0x4, offset = 0x4, fixed_abs, tag = 'smem constant byte address 0x4 - core index']
  #allocation1 [shape = 'u32[72,128]{1,0:T(1,128)}', space=vmem, size = 0x9000, scoped, tag = 'internal scratch']
  %s0 = inlined_call_operand.vmem [shape: f32[2,32], index: 0, kind: input, shape index: {}]
  %s1 = inlined_call_operand.vmem [shape: bf16[32,32], index: 1, kind: input, shape index: {}]
  %s2 = inlined_call_operand.vmem [shape: f32[1,32], index: 2, kind: input, shape index: {}]
  %s3 = inlined_call_operand.vmem [shape: bf16[32,32], index: 3, kind: input, shape index: {}]
  %s4 = inlined_call_operand.vmem [shape: f32[1,32], index: 4, kind: input, shape index: {}]
  %s5 = inlined_call_operand.vmem [shape: f32[32,4], index: 5, kind: input, shape index: {}]
  %s6 = inlined_call_operand.vmem [shape: f32[1,4], index: 6, kind: input, shape index: {}]
  %s7 = inlined_call_operand.hbm [shape: f32[2,4], index: 7, kind: output, shape index: {}]
  %s8 = sld [smem:[#allocation0]]
  $region38: #{tpu_custom_call.1} parent=0
    _
  %s10 = ssub.s32 1, %s8
  %s11 = scalar_select 0, %s10, %s8
  $region1: #{tpu_custom_call.1} parent=0
    #allocation2 [shape = 'u8[4096]{0}', space=vmem, size = 0x1000, scoped, tag = 'output window, operand 0, single buffered']
    #allocation3 [shape = 's32[1]{0}', space=sflag, size = 0x4, scoped, tag = 'scoped memory for tpu_custom_call.1']
    %12 = vsyncpa [#allocation3], 0
    // Predicated region
    $region2: #{tpu_custom_call.1} parent=1 // pred_check
      _
    $region3: #{tpu_custom_call.1} parent=1 // pred_check_branch
      %14 = sbr.rel (0) target = $region5
    $region4: #{tpu_custom_call.1} parent=1 // pred_region
      _
    $region5: #{tpu_custom_call.1} parent=1 // pred_fallthru
      _
    // Predicated region
    $region6: #{tpu_custom_call.1} parent=1 // pred_check
      _
    $region7: #{tpu_custom_call.1} parent=1 // pred_check_branch
      %16 = sbr.rel (0) target = $region9
    $region8: #{tpu_custom_call.1} parent=1 // pred_region
      _
    $region9: #{tpu_custom_call.1} parent=1 // pred_fallthru
      _
    // Predicated region
    $region10: #{tpu_custom_call.1} parent=1 // pred_check
      _
    $region11: #{tpu_custom_call.1} parent=1 // pred_check_branch
      %18 = sbr.rel (0) target = $region13
    $region12: #{tpu_custom_call.1} parent=1 // pred_region
      _
    $region13: #{tpu_custom_call.1} parent=1 // pred_fallthru
      _
    // Predicated region
    $region14: #{tpu_custom_call.1} parent=1 // pred_check
      _
    $region15: #{tpu_custom_call.1} parent=1 // pred_check_branch
      %20 = sbr.rel (0) target = $region17
    $region16: #{tpu_custom_call.1} parent=1 // pred_region
      _
    $region17: #{tpu_custom_call.1} parent=1 // pred_fallthru
      _
    // Predicated region
    $region18: #{tpu_custom_call.1} parent=1 // pred_check
      _
    $region19: #{tpu_custom_call.1} parent=1 // pred_check_branch
      %22 = sbr.rel (0) target = $region21
    $region20: #{tpu_custom_call.1} parent=1 // pred_region
      _
    $region21: #{tpu_custom_call.1} parent=1 // pred_fallthru
      _
    // Predicated region
    $region22: #{tpu_custom_call.1} parent=1 // pred_check
      _
    $region23: #{tpu_custom_call.1} parent=1 // pred_check_branch
      %24 = sbr.rel (0) target = $region25
    $region24: #{tpu_custom_call.1} parent=1 // pred_region
      _
    $region25: #{tpu_custom_call.1} parent=1 // pred_fallthru
      _
    // Predicated region
    $region26: #{tpu_custom_call.1} parent=1 // pred_check
      _
    $region27: #{tpu_custom_call.1} parent=1 // pred_check_branch
      %26 = sbr.rel (0) target = $region29
    $region28: #{tpu_custom_call.1} parent=1 // pred_region
      _
    $region29: #{tpu_custom_call.1} parent=1 // pred_fallthru
      _
    %v28 = vld [vmem:[%s0] sm:$0xff]
    %v29 = vpack.c.bf16 %v28, %v28
    %v30 = vld [vmem:[%s1] sm:$0xf]
    %v31 = vld [vmem:[%s1 + $0x4] sm:$0xf]
    %v32 = vld [vmem:[%s1 + $0x8] sm:$0xf]
    %v33 = vld [vmem:[%s1 + $0xc] sm:$0xf]
    %v34 = vld [vmem:[%s2] sm:$0x1]
    %v36 = vperm.slane %v34, 0
    %v42 = vunpack.c.l.b16 %v30
    %v43 = vunpack.c.l.b16 %v31
    %v44 = vunpack.c.l.b16 %v32
    %v45 = vunpack.c.l.b16 %v33
    %v46 = vpack.c.b16 %v43, %v42
    %v47 = vpack.c.b16 %v45, %v44
    %vm50 = vcmask 261120
    %v52 = vsel %vm50, %v29, 0
    %54 = vmatpush.bf16.msra.mxu0 0
    %55 = vmatpush.bf16.msra.mxu0 0
    %56 = vmatpush.bf16.msra.mxu0 0
    %57 = vmatpush.bf16.msra.mxu0 0
    %58 = vmatpush.bf16.msra.mxu0 0
    %59 = vmatpush.bf16.msra.mxu0 0
    %60 = vmatpush.bf16.msra.mxu0 %v47
    %61 = vmatpush.bf16.msra.mxu0 %v46
    %62 = vmatmul.bf16.gmra.mxu0 %v52
    %v63 = vpop.f32.mrf.mxu0
    %v64 = vadd.f32 %v36, %v63
    %v65 = vpop.f32.mrf.mxu0
    %66 = vdwg.mxu0
    %v67 = vtanh.pop %v64
    %v68 = vpack.c.bf16 %v67, %v67
    %v69 = vld [vmem:[%s3] sm:$0xf]
    %v70 = vld [vmem:[%s3 + $0x4] sm:$0xf]
    %v71 = vld [vmem:[%s3 + $0x8] sm:$0xf]
    %v72 = vld [vmem:[%s3 + $0xc] sm:$0xf]
    %v73 = vld [vmem:[%s4] sm:$0x1]
    %v75 = vperm.slane %v73, 0
    %v81 = vunpack.c.l.b16 %v69
    %v82 = vunpack.c.l.b16 %v70
    %v83 = vunpack.c.l.b16 %v71
    %v84 = vunpack.c.l.b16 %v72
    %v85 = vpack.c.b16 %v82, %v81
    %v86 = vpack.c.b16 %v84, %v83
    %v90 = vsel %vm50, %v68, 0
    %92 = vmatpush.bf16.msra.mxu0 0
    %93 = vmatpush.bf16.msra.mxu0 0
    %94 = vmatpush.bf16.msra.mxu0 0
    %95 = vmatpush.bf16.msra.mxu0 0
    %96 = vmatpush.bf16.msra.mxu0 0
    %97 = vmatpush.bf16.msra.mxu0 0
    %98 = vmatpush.bf16.msra.mxu0 %v86
    %99 = vmatpush.bf16.msra.mxu0 %v85
    %100 = vmatmul.bf16.gmra.mxu0 %v90
    %v101 = vpop.f32.mrf.mxu0
    %v102 = vadd.f32 %v75, %v101
    %v103 = vpop.f32.mrf.mxu0
    %104 = vdwg.mxu0
    %v105 = vtanh.pop %v102
    %v106 = vld [vmem:[%s5] sm:$0xff]
    %v107 = vld [vmem:[%s5 + $0x8] sm:$0xff]
    %v108 = vld [vmem:[%s5 + $0x10] sm:$0xff]
    %v109 = vld [vmem:[%s5 + $0x18] sm:$0xff]
    %v110 = vld [vmem:[%s6] sm:$0x1]
    %v112 = vperm.slane %v110, 0
    %v115 = vsel %vm50, %v105, 0
    %117 = vmatpush.msra.mxu0 0.0
    %118 = vmatpush.msra.mxu0 0.0
    %119 = vmatpush.msra.mxu0 0.0
    %120 = vmatpush.msra.mxu0 0.0
    %121 = vmatpush.msra.mxu0 0.0
    %122 = vmatpush.msra.mxu0 0.0
    %123 = vmatpush.msra.mxu0 0.0
    %124 = vmatpush.msra.mxu0 0.0
    %125 = vmatpush.msra.mxu0 0.0
    %126 = vmatpush.msra.mxu0 0.0
    %127 = vmatpush.msra.mxu0 0.0
    %128 = vmatpush.msra.mxu0 0.0
    %129 = vmatpush.msra.mxu0 %v109
    %130 = vmatpush.msra.mxu0 %v108
    %131 = vmatpush.msra.mxu0 %v107
    %132 = vmatpush.msra.mxu0 %v106
    %133 = vmatmul.f32.gmra.mxu0 %v115
    %v134 = vpop.f32.mrf.mxu0
    %v135 = vadd.f32 %v112, %v134
    %136 = vdwg.mxu0
    %vm137 = vcmask 31744
    %138 = vst.msk [vmem:[#allocation2] sm:$0xff] %vm137, %v135
    // Predicated region
    $region30: #{tpu_custom_call.1} parent=1 // pred_check
      _
    $region31: #{tpu_custom_call.1} parent=1 // pred_check_branch
      %140 = sbr.rel (0) target = $region33
    $region32: #{tpu_custom_call.1} parent=1 // pred_region
      %142 = vsyncadd [#allocation3], 96
      %s143 = sshll.u32 [#allocation2], 4
      %s144 = int_to_ptr.vmem [resolvable:$true] %s143
      %s145 = sshll.u32 %s7, 4
      %s146 = int_to_ptr.hbm [resolvable:$true] %s145
      %151 = dma.vmem_to_hbm [thread:$0]  %s144, 32, %s146, [#allocation3], 32, 32, 2
    $region33: #{tpu_custom_call.1} parent=1 // pred_fallthru
      _
    // Predicated region
    $region34: #{tpu_custom_call.1} parent=1 // pred_check
      _
    $region35: #{tpu_custom_call.1} parent=1 // pred_check_branch
      %153 = sbr.rel (0) target = $region37
    $region36: #{tpu_custom_call.1} parent=1 // pred_region
      %155 = dma.done [#allocation3], 128
    $region37: #{tpu_custom_call.1} parent=1 // pred_fallthru
      _
    %156 = vsyncpa [#allocation3], 1

</llo_original>
